<compile_context>
chip_gen: v7x
topology: tpu7x:2x2x1
jax: 0.10.0
libtpu: 0.0.40
codegen_flags: <defaults>
</compile_context>

<pallas_src>
import math

import jax
import jax.numpy as jnp
from jax.experimental import pallas as pl
from jax.experimental.pallas import tpu as pltpu


def _round_up(n, m):
    return ((n + m - 1) // m) * m


def _largest_divisor(total, candidates):
    for c in candidates:
        if total % c == 0:
            return c
    return None


def _vmem_capacity_bytes():
    try:
        return int(pltpu.get_tpu_info().vmem_capacity_bytes)
    except Exception:
        return 64 * 1024 * 1024  # conservative (v7x per-TC VMEM)


def _select_tiles(B, Kp, o1p, o2p, x_bytes, out_bytes, use_bias):
    # tn divides BOTH padded output widths -> every j-tile belongs to exactly
    # one output and stores stay lane-dense.
    g = math.gcd(o1p, o2p)
    tn = _largest_divisor(g, (512, 256, 128))
    # tk divides Kp exactly (Kp is a multiple of 128) -> no extra K padding.
    tk = _largest_divisor(Kp, (2048, 1024, 512, 256, 128))
    # tm: minimize M padding; keep 128/256-ish blocks for large batches.
    if B <= 256:
        tm = _round_up(B, 8)
    else:
        nb = -(-B // 256)
        tm = _round_up(-(-B // nb), 8)
    Bp = _round_up(B, tm)

    budget = min(24 * 1024 * 1024, _vmem_capacity_bytes() // 2)

    def footprint(tm_, tn_, tk_):
        nk_ = Kp // tk_
        f = 2 * tm_ * tk_ * x_bytes          # x blocks (double-buffered)
        f += 2 * tk_ * tn_ * 2               # bf16 weight blocks
        f += 2 * tm_ * tn_ * out_bytes * 2   # two outputs, double-buffered
        if use_bias:
            f += 2 * tn_ * 4
        if nk_ > 1:
            f += tm_ * tn_ * 4               # f32 accumulator scratch
        return f

    while footprint(tm, tn, tk) > budget and tk > 128:
        tk = _largest_divisor(
            Kp, tuple(c for c in (2048, 1024, 512, 256, 128) if c < tk))
    while footprint(tm, tn, tk) > budget and tn > 128:
        tn = _largest_divisor(g, tuple(c for c in (512, 256, 128) if c < tn))
    return tm, tn, tk, Bp


def _make_kernel(nj1, use_bias, multi_k):
    """Build the fused ConcatTable kernel for this (nj1, bias, K-depth) config."""
    if multi_k:
        if use_bias:
            def kernel(x_ref, w_ref, b_ref, o1_ref, o2_ref, acc_ref):
                j = pl.program_id(1)
                k = pl.program_id(2)

                @pl.when(k == 0)
                def _init():  # bias folded into accumulator init
                    acc_ref[...] = jnp.broadcast_to(b_ref[...], acc_ref.shape)

                acc_ref[...] += jnp.dot(x_ref[...].astype(w_ref.dtype),
                                        w_ref[...],
                                        preferred_element_type=jnp.float32)

                last = k == pl.num_programs(2) - 1

                @pl.when(jnp.logical_and(last, j < nj1))
                def _store1():
                    o1_ref[...] = acc_ref[...].astype(o1_ref.dtype)

                @pl.when(jnp.logical_and(last, j >= nj1))
                def _store2():
                    o2_ref[...] = acc_ref[...].astype(o2_ref.dtype)
        else:
            def kernel(x_ref, w_ref, o1_ref, o2_ref, acc_ref):
                j = pl.program_id(1)
                k = pl.program_id(2)

                @pl.when(k == 0)
                def _init():
                    acc_ref[...] = jnp.zeros_like(acc_ref)

                acc_ref[...] += jnp.dot(x_ref[...].astype(w_ref.dtype),
                                        w_ref[...],
                                        preferred_element_type=jnp.float32)

                last = k == pl.num_programs(2) - 1

                @pl.when(jnp.logical_and(last, j < nj1))
                def _store1():
                    o1_ref[...] = acc_ref[...].astype(o1_ref.dtype)

                @pl.when(jnp.logical_and(last, j >= nj1))
                def _store2():
                    o2_ref[...] = acc_ref[...].astype(o2_ref.dtype)
    else:
        # Fast path: whole K fits in one tile -> no accumulator scratch.
        if use_bias:
            def kernel(x_ref, w_ref, b_ref, o1_ref, o2_ref):
                j = pl.program_id(1)
                y = jnp.dot(x_ref[...].astype(w_ref.dtype), w_ref[...],
                            preferred_element_type=jnp.float32) + b_ref[...]

                @pl.when(j < nj1)
                def _store1():
                    o1_ref[...] = y.astype(o1_ref.dtype)

                @pl.when(j >= nj1)
                def _store2():
                    o2_ref[...] = y.astype(o2_ref.dtype)
        else:
            def kernel(x_ref, w_ref, o1_ref, o2_ref):
                j = pl.program_id(1)
                y = jnp.dot(x_ref[...].astype(w_ref.dtype), w_ref[...],
                            preferred_element_type=jnp.float32)

                @pl.when(j < nj1)
                def _store1():
                    o1_ref[...] = y.astype(o1_ref.dtype)

                @pl.when(j >= nj1)
                def _store2():
                    o2_ref[...] = y.astype(o2_ref.dtype)
    return kernel


def _fused_concat_linear(x2, w, b, o1p, o2p, out_dtype):
    """x2:(B,K) any float dtype; w:(Kp, o1p+o2p) bf16 (pre-padded, scale folded);
    b:(1, o1p+o2p) f32 or None.  Returns (y1:(Bp,o1p), y2:(Bp,o2p))."""
    B, K = x2.shape
    Kp, Np = w.shape
    assert Np == o1p + o2p and K <= Kp
    assert Kp % 128 == 0 and o1p % 128 == 0 and o2p % 128 == 0

    use_bias = b is not None
    x_bytes = jnp.dtype(x2.dtype).itemsize
    out_bytes = jnp.dtype(out_dtype).itemsize
    tm, tn, tk, Bp = _select_tiles(B, Kp, o1p, o2p, x_bytes, out_bytes, use_bias)

    xp = x2
    if (Bp, Kp) != (B, K):          # only pad when strictly needed
        xp = jnp.pad(x2, ((0, Bp - B), (0, Kp - K)))

    nm, nj1, nj2, nk = Bp // tm, o1p // tn, o2p // tn, Kp // tk
    grid = (nm, nj1 + nj2, nk)

    x_spec = pl.BlockSpec((tm, tk), lambda i, j, k: (i, k))
    w_spec = pl.BlockSpec((tk, tn), lambda i, j, k: (k, j))
    # Route each j-tile to the right output; out-of-range j's revisit the last
    # (already written) / first (written later) block and are never stored to.
    o1_spec = pl.BlockSpec((tm, tn), lambda i, j, k: (i, jnp.minimum(j, nj1 - 1)))
    o2_spec = pl.BlockSpec((tm, tn), lambda i, j, k: (i, jnp.maximum(j - nj1, 0)))

    in_specs = [x_spec, w_spec]
    args = [xp, w]
    if use_bias:
        in_specs.append(pl.BlockSpec((1, tn), lambda i, j, k: (0, j)))
        args.append(b)

    kernel = _make_kernel(nj1, use_bias, nk > 1)
    scratch = [pltpu.VMEM((tm, tn), jnp.float32)] if nk > 1 else []

    bytes_accessed = (xp.size * x_bytes + w.size * 2
                      + Bp * Np * out_bytes + (Np * 4 if use_bias else 0))

    y1, y2 = pl.pallas_call(
        kernel,
        out_shape=(jax.ShapeDtypeStruct((Bp, o1p), out_dtype),
                   jax.ShapeDtypeStruct((Bp, o2p), out_dtype)),
        grid_spec=pltpu.PrefetchScalarGridSpec(
            num_scalar_prefetch=0,
            grid=grid,
            in_specs=in_specs,
            out_specs=(o1_spec, o2_spec),
            scratch_shapes=scratch,
        ),
        compiler_params=pltpu.CompilerParams(
            # j must stay sequential (output blocks are revisited across j for
            # the y1/y2 routing); K must stay innermost for the accumulator.
            dimension_semantics=("parallel", "arbitrary", "arbitrary"),
            vmem_limit_bytes=32 * 1024 * 1024,
        ),
        cost_estimate=pl.CostEstimate(
            flops=2 * Bp * Np * Kp,
            transcendentals=0,
            bytes_accessed=bytes_accessed,
        ),
    )(*args)
    return y1, y2


def concat_table_linear(x, params):
    """ConcatTable of two (equalized-LR) linear layers sharing the same input x.
    Returns [layer1(x), layer2(x)], matching the PyTorch ConcatTable forward."""
    B = x.shape[0]
    x2 = x.reshape(B, -1)
    assert x2.shape[1] == params["in_features"]
    o1, o2 = params["split"]
    o1p, o2p = params["split_padded"]
    y1, y2 = _fused_concat_linear(x2, params["w"], params["b"], o1p, o2p, x.dtype)
    if y1.shape != (B, o1):
        y1 = y1[:B, :o1]
    if y2.shape != (B, o2):
        y2 = y2[:B, :o2]
    return [y1, y2]


class ConcatTable:
    """Generic fallback: applies two arbitrary callables to the same input."""
    # TODO(synk): arbitrary sub-modules cannot be fused into one Pallas kernel
    # generically; only the two-linear-layer case (concat_table_linear) is fused.
    def __init__(self, layer1, layer2):
        self.layer1, self.layer2 = layer1, layer2

    def __call__(self, x):
        return [self.layer1(x), self.layer2(x)]


def init_equalized_concat_table(key, in_features, out1, out2, bias=True):
    """Two equalized-LR linear layers, pre-fused AND pre-padded for the kernel.

    Per layer (PyTorch semantics):
        w ~ kaiming_normal (std = 1/sqrt(in_features))
        scale = rms(w); stored weight = w / scale; forward: (x*scale)@stored.T + b
    The runtime scale multiply is folded into the weight here, the fused weight
    is cast to bf16 once, and K / per-output N are padded to 128 multiples once,
    so the forward path does no per-call weight transformation.
    """
    k1, k2 = jax.random.split(key)
    Kp = _round_up(in_features, 128)
    o1p = _round_up(out1, 128)
    o2p = _round_up(out2, 128)

    def one_layer(k, out_f, out_p):
        std = 1.0 / jnp.sqrt(jnp.float32(in_features))
        w = jax.random.normal(k, (out_f, in_features), jnp.float32) * std
        scale = jnp.sqrt(jnp.mean(w ** 2))
        w_eff = (w / scale) * scale            # scale folded back in at init
        w_t = w_eff.T                          # (K, out_f)
        return jnp.pad(w_t, ((0, Kp - in_features), (0, out_p - out_f)))

    w1_t = one_layer(k1, out1, o1p)
    w2_t = one_layer(k2, out2, o2p)
    w_fused = jnp.concatenate([w1_t, w2_t], axis=1).astype(jnp.bfloat16)
    b_fused = jnp.zeros((1, o1p + o2p), jnp.float32) if bias else None
    return {
        "w": w_fused,
        "b": b_fused,
        "in_features": in_features,
        "split": (out1, out2),
        "split_padded": (o1p, o2p),
    }


if __name__ == "__main__":
    key = jax.random.PRNGKey(0)
    k_p, k_x, k_b = jax.random.split(key, 3)

    # Small but TPU-aligned shapes: lane-dense (multiple-of-128) outputs.
    batch, in_features, out1, out2 = 8, 256, 128, 128

    params = init_equalized_concat_table(k_p, in_features, out1, out2, bias=True)
    # Non-zero bias so the bias path is actually exercised.
    params["b"] = jax.random.normal(k_b, (1, out1 + out2), jnp.float32) * 0.1

    x = jax.random.normal(k_x, (batch, in_features), jnp.float32)

    y1, y2 = concat_table_linear(x, params)
    y1, y2 = jax.block_until_ready((y1, y2))

    # Pure-JAX reference with the same bf16-input / f32-accumulate contract.
    y_ref = jnp.dot(x.astype(jnp.bfloat16), params["w"],
                    preferred_element_type=jnp.float32) + params["b"]
    y1_ref = y_ref[:, :out1]
    y2_ref = y_ref[:, params["split_padded"][0]:params["split_padded"][0] + out2]

    assert y1.shape == (batch, out1) and y2.shape == (batch, out2)
    assert jnp.allclose(y1, y1_ref, atol=1e-2, rtol=1e-2), "layer1 mismatch"
    assert jnp.allclose(y2, y2_ref, atol=1e-2, rtol=1e-2), "layer2 mismatch"

    print("KERNEL_OK")
</pallas_src>

<mosaic_0001>
module attributes {stable_mosaic.version = 11 : i64} {
  func.func @kernel(%arg0: i32, %arg1: i32, %arg2: i32, %arg3: memref<8x256xf32, #tpu.memory_space<vmem>>, %arg4: memref<256x128xbf16, #tpu.memory_space<vmem>>, %arg5: memref<1x128xf32, #tpu.memory_space<vmem>>, %arg6: memref<8x128xf32, #tpu.memory_space<vmem>>, %arg7: memref<8x128xf32, #tpu.memory_space<vmem>>) attributes {dimension_semantics = [#tpu.dimension_semantics<parallel>, #tpu.dimension_semantics<arbitrary>, #tpu.dimension_semantics<arbitrary>], iteration_bounds = array<i64: 1, 2, 1>, scalar_prefetch = 0 : i64, scratch_operands = 0 : i64, tpu.core_type = #tpu.core_type<tc>, window_params = [{transform_indices = @transform_0, window_bounds = array<i64: 8, 256>}, {transform_indices = @transform_1, window_bounds = array<i64: 256, 128>}, {transform_indices = @transform_2, window_bounds = array<i64: 1, 128>}, {transform_indices = @transform_3, window_bounds = array<i64: 8, 128>}, {transform_indices = @transform_4, window_bounds = array<i64: 8, 128>}]} {
    %c0 = arith.constant 0 : index
    %c0_0 = arith.constant 0 : index
    %0 = vector.load %arg3[%c0, %c0_0] : memref<8x256xf32, #tpu.memory_space<vmem>>, vector<8x256xf32>
    %1 = arith.truncf %0 : vector<8x256xf32> to vector<8x256xbf16>
    %c0_1 = arith.constant 0 : index
    %c0_2 = arith.constant 0 : index
    %2 = vector.load %arg4[%c0_1, %c0_2] : memref<256x128xbf16, #tpu.memory_space<vmem>>, vector<256x128xbf16>
    %cst = arith.constant dense<0.000000e+00> : vector<8x128xf32>
    %3 = tpu.matmul %1, %2, %cst {dimension_numbers = #tpu.dot_dimension_numbers<[1], [0], [0], [1], [0, 0, 1, 1], [], []>} : vector<8x256xbf16>, vector<256x128xbf16>, vector<8x128xf32> -> vector<8x128xf32>
    %c0_3 = arith.constant 0 : index
    %c0_4 = arith.constant 0 : index
    %4 = vector.load %arg5[%c0_3, %c0_4] : memref<1x128xf32, #tpu.memory_space<vmem>>, vector<1x128xf32>
    %5 = vector.broadcast %4 : vector<1x128xf32> to vector<8x128xf32>
    %6 = arith.addf %3, %5 : vector<8x128xf32>
    %c1_i32 = arith.constant 1 : i32
    %7 = arith.cmpi slt, %arg1, %c1_i32 : i32
    %8 = arith.extui %7 : i1 to i32
    %c0_i32 = arith.constant 0 : i32
    %9 = arith.cmpi ne, %8, %c0_i32 : i32
    scf.if %9 {
      %c0_7 = arith.constant 0 : index
      %c0_8 = arith.constant 0 : index
      %13 = vector.load %arg6[%c0_7, %c0_8] : memref<8x128xf32, #tpu.memory_space<vmem>>, vector<8x128xf32>
      tpu.vector_store %arg6[%c0_7, %c0_8], %6 {strides = array<i32>} : memref<8x128xf32, #tpu.memory_space<vmem>>, vector<8x128xf32>,
    } else {
    }
    %c1_i32_5 = arith.constant 1 : i32
    %10 = arith.cmpi sge, %arg1, %c1_i32_5 : i32
    %11 = arith.extui %10 : i1 to i32
    %c0_i32_6 = arith.constant 0 : i32
    %12 = arith.cmpi ne, %11, %c0_i32_6 : i32
    scf.if %12 {
      %c0_7 = arith.constant 0 : index
      %c0_8 = arith.constant 0 : index
      %13 = vector.load %arg7[%c0_7, %c0_8] : memref<8x128xf32, #tpu.memory_space<vmem>>, vector<8x128xf32>
      tpu.vector_store %arg7[%c0_7, %c0_8], %6 {strides = array<i32>} : memref<8x128xf32, #tpu.memory_space<vmem>>, vector<8x128xf32>,
    } else {
    }
    return
  }
  func.func @transform_0(%arg0: i32, %arg1: i32, %arg2: i32) -> (i32, i32) {
    %c0_i32 = arith.constant 0 : i32
    return %arg0, %arg2 : i32, i32
  }
  func.func @transform_1(%arg0: i32, %arg1: i32, %arg2: i32) -> (i32, i32) {
    %c0_i32 = arith.constant 0 : i32
    return %arg2, %arg1 : i32, i32
  }
  func.func @transform_2(%arg0: i32, %arg1: i32, %arg2: i32) -> (i32, i32) {
    %c0_i32 = arith.constant 0 : i32
    %c0_i32_0 = arith.constant 0 : i32
    return %c0_i32, %arg1 : i32, i32
  }
  func.func @transform_3(%arg0: i32, %arg1: i32, %arg2: i32) -> (i32, i32) {
    %c0_i32 = arith.constant 0 : i32
    %0 = arith.minsi %arg1, %c0_i32 : i32
    %c0_i32_0 = arith.constant 0 : i32
    return %arg0, %0 : i32, i32
  }
  func.func @transform_4(%arg0: i32, %arg1: i32, %arg2: i32) -> (i32, i32) {
    %c1_i32 = arith.constant 1 : i32
    %0 = arith.subi %arg1, %c1_i32 : i32
    %c0_i32 = arith.constant 0 : i32
    %1 = arith.maxsi %0, %c0_i32 : i32
    %c0_i32_0 = arith.constant 0 : i32
    return %arg0, %1 : i32, i32
  }
}

</mosaic_0001>

<llo_original>
// kernel: tpu_custom_call.1
$region0: #{tpu_custom_call.1}
  #allocation0 [shape = 'u32[]', space=smem, size = 0x4, offset = 0x4, fixed_abs, tag = 'smem constant byte address 0x4 - core index']
  #allocation1 [shape = 'u32[144,128]{1,0:T(1,128)}', space=vmem, size = 0x12000, scoped, tag = 'internal scratch']
  %s0 = inlined_call_operand.hbm [shape: f32[8,256], index: 0, kind: input, shape index: {}]
  %s1 = inlined_call_operand.hbm [shape: bf16[256,256], index: 1, kind: input, shape index: {}]
  %s2 = inlined_call_operand.vmem [shape: f32[1,256], index: 2, kind: input, shape index: {}]
  %s3 = inlined_call_operand.hbm [shape: f32[8,128], index: 3, kind: output, shape index: {0}]
  %s4 = inlined_call_operand.hbm [shape: f32[8,128], index: 4, kind: output, shape index: {1}]
  %5 = xla_tuple %s3, %s4
  %s6 = sld [smem:[#allocation0]]
  $region69: #{tpu_custom_call.1} parent=0
    _
  %s8 = ssub.s32 1, %s6
  %s9 = scalar_select 0, %s8, %s6
  $region1: #{tpu_custom_call.1} parent=0
    #allocation2 [shape = 'u8[8192]{0}', space=vmem, size = 0x2000, scoped, tag = 'input window, operand 0, single buffered']
    #allocation3 [shape = 's32[2]{0}', space=sflag, size = 0x8, scoped, tag = 'scoped memory for tpu_custom_call.1']
    #allocation4 [shape = 's32[2]{0}', space=sflag, size = 0x8, scoped, tag = 'scoped memory for tpu_custom_call.1']
    #allocation5 [shape = 'u8[131072]{0}', space=vmem, size = 0x20000, scoped, tag = 'input window, operand 1']
    #allocation6 [shape = 's32[2]{0}', space=sflag, size = 0x8, scoped, tag = 'scoped memory for tpu_custom_call.1']
    #allocation7 [shape = 'u8[8192]{0}', space=vmem, size = 0x2000, scoped, tag = 'output window, operand 0']
    #allocation8 [shape = 'u8[8192]{0}', space=vmem, size = 0x2000, scoped, tag = 'output window, operand 1']
    #allocation9 [shape = 's32[2]{0}', space=sflag, size = 0x8, scoped, tag = 'scoped memory for tpu_custom_call.1']
    %10 = vsyncpa [#allocation3], 0
    %11 = vsyncpa [#allocation6], 0
    %s12 = scalar_lea.sflag [#allocation6], 1
    %13 = vsyncpa %s12, 0
    %14 = vsyncpa [#allocation4], 0
    %s15 = scalar_lea.sflag [#allocation4], 1
    %16 = vsyncpa %s15, 0
    %17 = vsyncpa [#allocation9], 0
    %s18 = scalar_lea.sflag [#allocation9], 1
    %19 = vsyncpa %s18, 0
    loop: start=0, step=1, limit=4
    $region2: #{tpu_custom_call.1} parent=1 // loop_pre_header
      _
    $region3: #{tpu_custom_call.1} parent=1 // loop_header
      %s21 = sphi 0, %s25
      %p22 = scmp.ge.s32.totalorder %s21, 4
      %s28 = sphi 0, %s47
      %s29 = sphi 0, %s43
      %s30 = sphi 0, %s39
      %s31 = sphi 0, %s28
      %s32 = sphi 0, %s29
      %s33 = sphi 0, %s30
      %s34 = sphi 0, %s31
      %s35 = sphi 0, %s32
      %s36 = sphi 0, %s33
      %s52 = sphi 0, %s54
      %s55 = sphi 0, %s52
      %s56 = sphi 0, %s55
      %s72 = sphi 0, %s56
      %s80 = sphi 0, %s82
      %s83 = sphi 0, %s80
      %s84 = sphi 0, %s83
      %s100 = sphi 0, %s84
      %s106 = sphi 0, %s108
      %s109 = sphi 0, %s106
      %s110 = sphi 0, %s109
      %s126 = sphi 0, %s110
      %s138 = sphi 0, %s140
      %s141 = sphi 0, %s138
      %s142 = sphi 0, %s141
      %s158 = sphi 0, %s142
      %s172 = sphi 0, %s174
      %s175 = sphi 0, %s172
      %s176 = sphi 0, %s175
      %s192 = sphi 0, %s176
    $region4: #{tpu_custom_call.1} parent=1 // loop_header_branch
      %24 = sbr.rel (%p22) target = $region8
    $region5: #{tpu_custom_call.1} parent=1 // loop_body
      %s26 = ssub.s32 %s21, 1
      %s27 = ssub.s32 %s21, 2
      %s37 = sadd.s32 1, %s30
      %p38 = scmp.ge.s32.totalorder %s37, 1
      %s39 = scalar_select %p38, 0, %s37
      %s40 = sadd.s32 1, %s29
      %s41 = scalar_select %p38, %s40, %s29
      %p42 = scmp.ge.s32.totalorder %s41, 2
      %s43 = scalar_select %p42, 0, %s41
      %s44 = sadd.s32 1, %s28
      %s45 = scalar_select %p42, %s44, %s28
      %p46 = scmp.ge.s32.totalorder %s45, 1
      %s47 = scalar_select %p46, 0, %s45
      %s48 = ssub.s32 %s28, %s47
      %s49 = ssub.s32 %s30, %s39
      %s50 = sor.u32 %s48, %s49
      %p51 = scmp.eq.s32.totalorder %s50, 0
      %s53 = sadd.s32 %s52, 1
      %s54 = scalar_select %p51, %s52, %s53
      %p57 = pneg %p51
      %p58 = scmp.eq.s32.totalorder %s21, 1
      %p59 = por %p57, %p58
      %p60 = scmp.ne.s32.totalorder %s52, %s55
      %p61 = scmp.eq.s32.totalorder %s21, 0
      %p62 = por %p60, %p61
      %p63 = scmp.ne.s32.totalorder %s52, %s55
      %p64 = scmp.eq.s32.totalorder %s26, 1
      %p65 = por %p63, %p64
      %p66 = scmp.ne.s32.totalorder %s55, %s56
      %p67 = scmp.eq.s32.totalorder %s26, 0
      %p68 = por %p66, %p67
      %p69 = scmp.ne.s32.totalorder %s55, %s56
      %p70 = scmp.eq.s32.totalorder %s27, 1
      %p71 = por %p69, %p70
      %p73 = scmp.ne.s32.totalorder %s56, %s72
      %p74 = scmp.eq.s32.totalorder %s27, 0
      %p75 = por %p73, %p74
      %s76 = ssub.s32 %s30, %s39
      %s77 = ssub.s32 %s29, %s43
      %s78 = sor.u32 %s76, %s77
      %p79 = scmp.eq.s32.totalorder %s78, 0
      %s81 = sadd.s32 %s80, 1
      %s82 = scalar_select %p79, %s80, %s81
      %p85 = pneg %p79
      %p86 = scmp.eq.s32.totalorder %s21, 1
      %p87 = por %p85, %p86
      %p88 = scmp.ne.s32.totalorder %s80, %s83
      %p89 = scmp.eq.s32.totalorder %s21, 0
      %p90 = por %p88, %p89
      %p91 = scmp.ne.s32.totalorder %s80, %s83
      %p92 = scmp.eq.s32.totalorder %s26, 1
      %p93 = por %p91, %p92
      %p94 = scmp.ne.s32.totalorder %s83, %s84
      %p95 = scmp.eq.s32.totalorder %s26, 0
      %p96 = por %p94, %p95
      %p97 = scmp.ne.s32.totalorder %s83, %s84
      %p98 = scmp.eq.s32.totalorder %s27, 1
      %p99 = por %p97, %p98
      %p101 = scmp.ne.s32.totalorder %s84, %s100
      %p102 = scmp.eq.s32.totalorder %s27, 0
      %p103 = por %p101, %p102
      %s104 = ssub.s32 %s29, %s43
      %p105 = scmp.eq.s32.totalorder %s104, 0
      %s107 = sadd.s32 %s106, 1
      %s108 = scalar_select %p105, %s106, %s107
      %p111 = pneg %p105
      %p112 = scmp.eq.s32.totalorder %s21, 1
      %p113 = por %p111, %p112
      %p114 = scmp.ne.s32.totalorder %s106, %s109
      %p115 = scmp.eq.s32.totalorder %s21, 0
      %p116 = por %p114, %p115
      %p117 = scmp.ne.s32.totalorder %s106, %s109
      %p118 = scmp.eq.s32.totalorder %s26, 1
      %p119 = por %p117, %p118
      %p120 = scmp.ne.s32.totalorder %s109, %s110
      %p121 = scmp.eq.s32.totalorder %s26, 0
      %p122 = por %p120, %p121
      %p123 = scmp.ne.s32.totalorder %s109, %s110
      %p124 = scmp.eq.s32.totalorder %s27, 1
      %p125 = por %p123, %p124
      %p127 = scmp.ne.s32.totalorder %s110, %s126
      %p128 = scmp.eq.s32.totalorder %s27, 0
      %p129 = por %p127, %p128
      %p130 = scmp.lt.s32.totalorder %s29, 0
      %s131 = scalar_select %p130, %s29, 0
      %p132 = scmp.lt.s32.totalorder %s43, 0
      %s133 = scalar_select %p132, %s43, 0
      %s134 = ssub.s32 %s28, %s47
      %s135 = ssub.s32 %s131, %s133
      %s136 = sor.u32 %s134, %s135
      %p137 = scmp.eq.s32.totalorder %s136, 0
      %s139 = sadd.s32 %s138, 1
      %s140 = scalar_select %p137, %s138, %s139
      %p143 = pneg %p137
      %p144 = scmp.eq.s32.totalorder %s21, 1
      %p145 = por %p143, %p144
      %p146 = scmp.ne.s32.totalorder %s138, %s141
      %p147 = scmp.eq.s32.totalorder %s21, 0
      %p148 = por %p146, %p147
      %p149 = scmp.ne.s32.totalorder %s138, %s141
      %p150 = scmp.eq.s32.totalorder %s26, 1
      %p151 = por %p149, %p150
      %p152 = scmp.ne.s32.totalorder %s141, %s142
      %p153 = scmp.eq.s32.totalorder %s26, 0
      %p154 = por %p152, %p153
      %p155 = scmp.ne.s32.totalorder %s141, %s142
      %p156 = scmp.eq.s32.totalorder %s27, 1
      %p157 = por %p155, %p156
      %p159 = scmp.ne.s32.totalorder %s142, %s158
      %p160 = scmp.eq.s32.totalorder %s27, 0
      %p161 = por %p159, %p160
      %s162 = ssub.s32 %s29, 1
      %p163 = scmp.gt.s32.totalorder %s162, 0
      %s164 = scalar_select %p163, %s162, 0
      %s165 = ssub.s32 %s43, 1
      %p166 = scmp.gt.s32.totalorder %s165, 0
      %s167 = scalar_select %p166, %s165, 0
      %s168 = ssub.s32 %s28, %s47
      %s169 = ssub.s32 %s164, %s167
      %s170 = sor.u32 %s168, %s169
      %p171 = scmp.eq.s32.totalorder %s170, 0
      %s173 = sadd.s32 %s172, 1
      %s174 = scalar_select %p171, %s172, %s173
      %p177 = pneg %p171
      %p178 = scmp.eq.s32.totalorder %s21, 1
      %p179 = por %p177, %p178
      %p180 = scmp.ne.s32.totalorder %s172, %s175
      %p181 = scmp.eq.s32.totalorder %s21, 0
      %p182 = por %p180, %p181
      %p183 = scmp.ne.s32.totalorder %s172, %s175
      %p184 = scmp.eq.s32.totalorder %s26, 1
      %p185 = por %p183, %p184
      %p186 = scmp.ne.s32.totalorder %s175, %s176
      %p187 = scmp.eq.s32.totalorder %s26, 0
      %p188 = por %p186, %p187
      %p189 = scmp.ne.s32.totalorder %s175, %s176
      %p190 = scmp.eq.s32.totalorder %s27, 1
      %p191 = por %p189, %p190
      %p193 = scmp.ne.s32.totalorder %s176, %s192
      %p194 = scmp.eq.s32.totalorder %s27, 0
      %p195 = por %p193, %p194
      %p196 = scmp.le.s32.totalorder 1, %s21
      %p197 = scmp.lt.s32.totalorder %s21, 3
      %p198 = pnand %p196, %p197
      %p199 = pneg %p198
      // Predicated region
      $region9: #{tpu_custom_call.1} parent=5 // pred_check
        _
      $region10: #{tpu_custom_call.1} parent=5 // pred_check_branch
        %201 = sbr.rel (%p198) target = $region12
      $region11: #{tpu_custom_call.1} parent=5 // pred_region
        %s202 = ssub.s32 %s21, 1
        // Predicated region
        $region13: #{tpu_custom_call.1} parent=11 // pred_check
          %p203 = pneg %p68
        $region14: #{tpu_custom_call.1} parent=11 // pred_check_branch
          %205 = sbr.rel (%p203) target = $region16
        $region15: #{tpu_custom_call.1} parent=11 // pred_region
          %s206 = smul.u32 2, %s33
          %s208 = ssub.s32 256, 256
          %209 = vsyncadd [#allocation3], %s208
          %s210 = smul.addr %s31, 2
          %s211 = sadd.s32 %s206, %s210
          %s212 = smul.addr %s211, 128
          %s213 = scalar_lea.hbm %s0, %s212
          %s215 = sshll.u32 [#allocation2], 4
          %s216 = int_to_ptr.vmem [resolvable:$true] %s215
          %218 = dma.hbm_to_vmem [thread:$0]  %s213, 256, %s216, [#allocation3]
        $region16: #{tpu_custom_call.1} parent=11 // pred_fallthru
          _
      $region12: #{tpu_custom_call.1} parent=5 // pred_fallthru
        _
      %p219 = scmp.lt.s32.totalorder %s21, 2
      // Predicated region
      $region17: #{tpu_custom_call.1} parent=5 // pred_check
        %p220 = pneg %p219
      $region18: #{tpu_custom_call.1} parent=5 // pred_check_branch
        %222 = sbr.rel (%p220) target = $region20
      $region19: #{tpu_custom_call.1} parent=5 // pred_region
        // Predicated region
        $region21: #{tpu_custom_call.1} parent=19 // pred_check
          %p223 = pneg %p90
        $region22: #{tpu_custom_call.1} parent=19 // pred_check_branch
          %225 = sbr.rel (%p223) target = $region24
        $region23: #{tpu_custom_call.1} parent=19 // pred_region
          %s226 = sand.u32 %s80, 1
          %s227 = scalar_lea.sflag [#allocation6], %s226
          %s228 = sand.u32 %s80, 1
          %s229 = smul.addr %s228, 128
          %s230 = scalar_lea.vmem [#allocation5], %s229
          %s231 = smul.u32 32, %s30
          %s233 = ssub.s32 2048, 2048
          %234 = vsyncadd %s227, %s233
          %s235 = smul.addr %s231, 2
          %s236 = sadd.s32 %s29, %s235
          %s237 = smul.addr %s236, 64
          %s238 = scalar_lea.hbm %s1, %s237
          %s239 = sshll.u32 %s230, 4
          %s240 = int_to_ptr.vmem [resolvable:$true] %s239
          %245 = dma.hbm_to_vmem [thread:$0]  %s238, 2048, %s240, %s227, 128, 64, 4
        $region24: #{tpu_custom_call.1} parent=19 // pred_fallthru
          _
        // Predicated region
        $region25: #{tpu_custom_call.1} parent=19 // pred_check
          %p246 = pneg %p116
        $region26: #{tpu_custom_call.1} parent=19 // pred_check_branch
          %248 = sbr.rel (%p246) target = $region28
        $region27: #{tpu_custom_call.1} parent=19 // pred_region
          %p249 = scmp.lt.s32.totalorder %s29, 1
          %s250 = scalar_select %p249, %s29, 1
          %s251 = scalar_lea.vmem %s2, %s250
        $region28: #{tpu_custom_call.1} parent=19 // pred_fallthru
          _
      $region20: #{tpu_custom_call.1} parent=5 // pred_fallthru
        _
      %p252 = scmp.le.s32.totalorder 1, %s21
      %p253 = scmp.lt.s32.totalorder %s21, 3
      %p254 = pnand %p252, %p253
      %p255 = pneg %p254
      // Predicated region
      $region29: #{tpu_custom_call.1} parent=5 // pred_check
        _
      $region30: #{tpu_custom_call.1} parent=5 // pred_check_branch
        %257 = sbr.rel (%p254) target = $region32
      $region31: #{tpu_custom_call.1} parent=5 // pred_region
        %s258 = ssub.s32 %s21, 1
        // Predicated region
        $region33: #{tpu_custom_call.1} parent=31 // pred_check
          %p259 = pneg %p68
        $region34: #{tpu_custom_call.1} parent=31 // pred_check_branch
          %261 = sbr.rel (%p259) target = $region36
        $region35: #{tpu_custom_call.1} parent=31 // pred_region
          %262 = dma.done [#allocation3], 256
        $region36: #{tpu_custom_call.1} parent=31 // pred_fallthru
          _
        %s263 = sand.u32 %s83, 1
        %s264 = scalar_lea.sflag [#allocation6], %s263
        %s265 = sand.u32 %s83, 1
        %s266 = smul.addr %s265, 128
        %s267 = scalar_lea.vmem [#allocation5], %s266
        // Predicated region
        $region37: #{tpu_custom_call.1} parent=31 // pred_check
          %p268 = pneg %p96
        $region38: #{tpu_custom_call.1} parent=31 // pred_check_branch
          %270 = sbr.rel (%p268) target = $region40
        $region39: #{tpu_custom_call.1} parent=31 // pred_region
          %271 = dma.done %s264, 2048
        $region40: #{tpu_custom_call.1} parent=31 // pred_fallthru
          _
        %p272 = pneg %p68
        %p273 = pneg %p65
        %s274 = sand.u32 %s83, 1
        %s275 = scalar_lea.sflag [#allocation6], %s274
        %s276 = sand.u32 %s83, 1
        %s277 = smul.addr %s276, 128
        %s278 = scalar_lea.vmem [#allocation5], %s277
        %p279 = pneg %p96
        %p280 = pneg %p93
        %p281 = scmp.lt.s32.totalorder %s32, 1
        %s282 = scalar_select %p281, %s32, 1
        %s283 = scalar_lea.vmem %s2, %s282
        %p284 = pneg %p122
        %p285 = pneg %p119
        %p286 = pneg %p154
        %p287 = pneg %p151
        %s288 = sand.u32 %s141, 1
        %s289 = scalar_lea.sflag [#allocation4], %s288
        %s290 = sand.u32 %s141, 1
        %s291 = smul.addr %s290, 8
        %s292 = scalar_lea.vmem [#allocation7], %s291
        %p293 = pneg %p188
        %p294 = pneg %p185
        %s295 = sand.u32 %s175, 1
        %s296 = scalar_lea.sflag [#allocation9], %s295
        %s297 = sand.u32 %s175, 1
        %s298 = smul.addr %s297, 8
        %s299 = scalar_lea.vmem [#allocation8], %s298
        %s300 = smul.u32 2, %s33
        %s301 = smul.u32 32, %s33
        %p302 = scmp.lt.s32.totalorder %s32, 1
        %s303 = scalar_select %p302, %s32, 1
        %s304 = scalar_lea.vmem %s2, %s303
        %p305 = scmp.lt.s32.totalorder %s32, 0
        %s306 = scalar_select %p305, %s32, 0
        %s307 = ssub.s32 %s32, 1
        %p308 = scmp.gt.s32.totalorder %s307, 0
        %s309 = scalar_select %p308, %s307, 0
        %v311 = vld [vmem:[#allocation2] sm:$0xff]
        %v312 = vld [vmem:[#allocation2 + $0x8] sm:$0xff]
        %v313 = vpack.c.bf16 %v311, %v311
        %v314 = vpack.c.bf16 %v312, %v312
        %v315 = vld [vmem:[%s267] sm:$0xf]
        %v316 = vld [vmem:[%s267 + $0x4] sm:$0xf]
        %v317 = vld [vmem:[%s267 + $0x8] sm:$0xf]
        %v318 = vld [vmem:[%s267 + $0xc] sm:$0xf]
        %v319 = vld [vmem:[%s267 + $0x10] sm:$0xf]
        %v320 = vld [vmem:[%s267 + $0x14] sm:$0xf]
        %v321 = vld [vmem:[%s267 + $0x18] sm:$0xf]
        %v322 = vld [vmem:[%s267 + $0x1c] sm:$0xf]
        %v323 = vld [vmem:[%s267 + $0x20] sm:$0xf]
        %v324 = vld [vmem:[%s267 + $0x24] sm:$0xf]
        %v325 = vld [vmem:[%s267 + $0x28] sm:$0xf]
        %v326 = vld [vmem:[%s267 + $0x2c] sm:$0xf]
        %v327 = vld [vmem:[%s267 + $0x30] sm:$0xf]
        %v328 = vld [vmem:[%s267 + $0x34] sm:$0xf]
        %v329 = vld [vmem:[%s267 + $0x38] sm:$0xf]
        %v330 = vld [vmem:[%s267 + $0x3c] sm:$0xf]
        %v331 = vld [vmem:[%s267 + $0x40] sm:$0xf]
        %v332 = vld [vmem:[%s267 + $0x44] sm:$0xf]
        %v333 = vld [vmem:[%s267 + $0x48] sm:$0xf]
        %v334 = vld [vmem:[%s267 + $0x4c] sm:$0xf]
        %v335 = vld [vmem:[%s267 + $0x50] sm:$0xf]
        %v336 = vld [vmem:[%s267 + $0x54] sm:$0xf]
        %v337 = vld [vmem:[%s267 + $0x58] sm:$0xf]
        %v338 = vld [vmem:[%s267 + $0x5c] sm:$0xf]
        %v339 = vld [vmem:[%s267 + $0x60] sm:$0xf]
        %v340 = vld [vmem:[%s267 + $0x64] sm:$0xf]
        %v341 = vld [vmem:[%s267 + $0x68] sm:$0xf]
        %v342 = vld [vmem:[%s267 + $0x6c] sm:$0xf]
        %v343 = vld [vmem:[%s267 + $0x70] sm:$0xf]
        %v344 = vld [vmem:[%s267 + $0x74] sm:$0xf]
        %v345 = vld [vmem:[%s267 + $0x78] sm:$0xf]
        %v346 = vld [vmem:[%s267 + $0x7c] sm:$0xf]
        %v347 = vld [vmem:[%s304] sm:$0x1]
        %v349 = vlaneseq
        %v350 = vshrl.u32 %v349, 7
        %v351 = vsub.s32 0, %v350
        %v352 = vrot.slane %v347, %v351
        %v386 = vunpack.c.l.b16 %v315
        %v387 = vunpack.c.l.b16 %v316
        %v388 = vunpack.c.l.b16 %v317
        %v389 = vunpack.c.l.b16 %v318
        %v390 = vunpack.c.l.b16 %v319
        %v391 = vunpack.c.l.b16 %v320
        %v392 = vunpack.c.l.b16 %v321
        %v393 = vunpack.c.l.b16 %v322
        %v394 = vunpack.c.l.b16 %v323
        %v395 = vunpack.c.l.b16 %v324
        %v396 = vunpack.c.l.b16 %v325
        %v397 = vunpack.c.l.b16 %v326
        %v398 = vunpack.c.l.b16 %v327
        %v399 = vunpack.c.l.b16 %v328
        %v400 = vunpack.c.l.b16 %v329
        %v401 = vunpack.c.l.b16 %v330
        %v402 = vunpack.c.l.b16 %v331
        %v403 = vunpack.c.l.b16 %v332
        %v404 = vunpack.c.l.b16 %v333
        %v405 = vunpack.c.l.b16 %v334
        %v406 = vunpack.c.l.b16 %v335
        %v407 = vunpack.c.l.b16 %v336
        %v408 = vunpack.c.l.b16 %v337
        %v409 = vunpack.c.l.b16 %v338
        %v410 = vunpack.c.l.b16 %v339
        %v411 = vunpack.c.l.b16 %v340
        %v412 = vunpack.c.l.b16 %v341
        %v413 = vunpack.c.l.b16 %v342
        %v414 = vunpack.c.l.b16 %v343
        %v415 = vunpack.c.l.b16 %v344
        %v416 = vunpack.c.l.b16 %v345
        %v417 = vunpack.c.l.b16 %v346
        %v418 = vpack.c.b16 %v387, %v386
        %v419 = vpack.c.b16 %v389, %v388
        %v420 = vpack.c.b16 %v391, %v390
        %v421 = vpack.c.b16 %v393, %v392
        %v422 = vpack.c.b16 %v395, %v394
        %v423 = vpack.c.b16 %v397, %v396
        %v424 = vpack.c.b16 %v399, %v398
        %v425 = vpack.c.b16 %v401, %v400
        %v426 = vpack.c.b16 %v403, %v402
        %v427 = vpack.c.b16 %v405, %v404
        %v428 = vpack.c.b16 %v407, %v406
        %v429 = vpack.c.b16 %v409, %v408
        %v430 = vpack.c.b16 %v411, %v410
        %v431 = vpack.c.b16 %v413, %v412
        %v432 = vpack.c.b16 %v415, %v414
        %v433 = vpack.c.b16 %v417, %v416
        %450 = vmatprep.subr.bf16.mxu0 0
        %451 = vmatpush1.bf16.msra.mxu0 %v418
        %452 = vmatprep.subr.bf16.mxu0 0
        %453 = vmatpush1.bf16.msra.mxu0 %v419
        %454 = vmatprep.subr.bf16.mxu0 0
        %455 = vmatpush1.bf16.msra.mxu0 %v420
        %456 = vmatprep.subr.bf16.mxu0 0
        %457 = vmatpush1.bf16.msra.mxu0 %v421
        %458 = vmatprep.subr.bf16.mxu0 0
        %459 = vmatpush1.bf16.msra.mxu0 %v422
        %460 = vmatprep.subr.bf16.mxu0 0
        %461 = vmatpush1.bf16.msra.mxu0 %v423
        %462 = vmatprep.subr.bf16.mxu0 0
        %463 = vmatpush1.bf16.msra.mxu0 %v424
        %464 = vmatprep.subr.bf16.mxu0 0
        %465 = vmatpush1.bf16.msra.mxu0 %v425
        %466 = vmatprep.subr.bf16.mxu0 0
        %467 = vmatpush1.bf16.msra.mxu0 %v426
        %468 = vmatprep.subr.bf16.mxu0 0
        %469 = vmatpush1.bf16.msra.mxu0 %v427
        %470 = vmatprep.subr.bf16.mxu0 0
        %471 = vmatpush1.bf16.msra.mxu0 %v428
        %472 = vmatprep.subr.bf16.mxu0 0
        %473 = vmatpush1.bf16.msra.mxu0 %v429
        %474 = vmatprep.subr.bf16.mxu0 0
        %475 = vmatpush1.bf16.msra.mxu0 %v430
        %476 = vmatprep.subr.bf16.mxu0 0
        %477 = vmatpush1.bf16.msra.mxu0 %v431
        %478 = vmatprep.subr.bf16.mxu0 0
        %479 = vmatpush1.bf16.msra.mxu0 %v432
        %480 = vmatprep.subr.bf16.mxu0 0
        %481 = vmatpush1.bf16.msra.mxu0 %v433
        %482 = vmatprep.mubr.bf16.mxu0 %v314
        %483 = vmatmul.mubr.bf16.gmra.mrb[0].mxu0 %v313
        %v484 = vpop.f32.mrb[0].mxu0
        %v485 = vadd.f32 %v352, %v484
        %v486 = vpop.f32.mrb[0].mxu0
        %v487 = vpop.f32.mrb[0].mxu0
        %v488 = vpop.f32.mrb[0].mxu0
        %489 = vdwg.mxu0
        %p490 = scmp.lt.s32.totalorder %s32, 1
        // Predicated region
        $region41: #{tpu_custom_call.1} parent=31 // pred_check
          %p491 = pneg %p490
        $region42: #{tpu_custom_call.1} parent=31 // pred_check_branch
          %493 = sbr.rel (%p491) target = $region44
        $region43: #{tpu_custom_call.1} parent=31 // pred_region
          %494 = vst [vmem:[%s292] sm:$0xff] %v485
        $region44: #{tpu_custom_call.1} parent=31 // pred_fallthru
          _
        %p495 = scmp.ge.s32.totalorder %s32, 1
        // Predicated region
        $region45: #{tpu_custom_call.1} parent=31 // pred_check
          %p496 = pneg %p495
        $region46: #{tpu_custom_call.1} parent=31 // pred_check_branch
          %498 = sbr.rel (%p496) target = $region48
        $region47: #{tpu_custom_call.1} parent=31 // pred_region
          %499 = vst [vmem:[%s299] sm:$0xff] %v485
        $region48: #{tpu_custom_call.1} parent=31 // pred_fallthru
          _
        %s500 = sand.u32 %s141, 1
        %s501 = scalar_lea.sflag [#allocation4], %s500
        %s502 = sand.u32 %s141, 1
        %s503 = smul.addr %s502, 8
        %s504 = scalar_lea.vmem [#allocation7], %s503
        %s505 = sand.u32 %s175, 1
        %s506 = scalar_lea.sflag [#allocation9], %s505
        %s507 = sand.u32 %s175, 1
        %s508 = smul.addr %s507, 8
        %s509 = scalar_lea.vmem [#allocation8], %s508
        // Predicated region
        $region49: #{tpu_custom_call.1} parent=31 // pred_check
          %p510 = pneg %p151
        $region50: #{tpu_custom_call.1} parent=31 // pred_check_branch
          %512 = sbr.rel (%p510) target = $region52
        $region51: #{tpu_custom_call.1} parent=31 // pred_region
          %p513 = scmp.lt.s32.totalorder %s32, 0
          %s514 = scalar_select %p513, %s32, 0
          %s516 = ssub.s32 128, 128
          %517 = vsyncadd %s501, %s516
          %s518 = sadd.s32 %s514, %s31
          %s519 = smul.addr %s518, 128
          %s520 = scalar_lea.hbm %s3, %s519
          %s522 = sshll.u32 %s504, 4
          %s523 = int_to_ptr.vmem [resolvable:$true] %s522
          %525 = dma.vmem_to_hbm [thread:$0]  %s523, 128, %s520, %s501
        $region52: #{tpu_custom_call.1} parent=31 // pred_fallthru
          _
        // Predicated region
        $region53: #{tpu_custom_call.1} parent=31 // pred_check
          %p526 = pneg %p185
        $region54: #{tpu_custom_call.1} parent=31 // pred_check_branch
          %528 = sbr.rel (%p526) target = $region56
        $region55: #{tpu_custom_call.1} parent=31 // pred_region
          %s529 = ssub.s32 %s32, 1
          %p530 = scmp.gt.s32.totalorder %s529, 0
          %s531 = scalar_select %p530, %s529, 0
          %s533 = ssub.s32 128, 128
          %534 = vsyncadd %s506, %s533
          %s535 = sadd.s32 %s531, %s31
          %s536 = smul.addr %s535, 128
          %s537 = scalar_lea.hbm %s4, %s536
          %s539 = sshll.u32 %s509, 4
          %s540 = int_to_ptr.vmem [resolvable:$true] %s539
          %542 = dma.vmem_to_hbm [thread:$0]  %s540, 128, %s537, %s506
        $region56: #{tpu_custom_call.1} parent=31 // pred_fallthru
          _
      $region32: #{tpu_custom_call.1} parent=5 // pred_fallthru
        _
      %p543 = scmp.le.s32.totalorder 2, %s21
      // Predicated region
      $region57: #{tpu_custom_call.1} parent=5 // pred_check
        %p544 = pneg %p543
      $region58: #{tpu_custom_call.1} parent=5 // pred_check_branch
        %546 = sbr.rel (%p544) target = $region60
      $region59: #{tpu_custom_call.1} parent=5 // pred_region
        %s547 = ssub.s32 %s21, 2
        // Predicated region
        $region61: #{tpu_custom_call.1} parent=59 // pred_check
          %p548 = pneg %p157
        $region62: #{tpu_custom_call.1} parent=59 // pred_check_branch
          %550 = sbr.rel (%p548) target = $region64
        $region63: #{tpu_custom_call.1} parent=59 // pred_region
          %s551 = sand.u32 %s142, 1
          %s552 = scalar_lea.sflag [#allocation4], %s551
          %s553 = sand.u32 %s142, 1
          %s554 = smul.addr %s553, 8
          %s555 = scalar_lea.vmem [#allocation7], %s554
          %556 = dma.done %s552, 128
        $region64: #{tpu_custom_call.1} parent=59 // pred_fallthru
          _
        // Predicated region
        $region65: #{tpu_custom_call.1} parent=59 // pred_check
          %p557 = pneg %p191
        $region66: #{tpu_custom_call.1} parent=59 // pred_check_branch
          %559 = sbr.rel (%p557) target = $region68
        $region67: #{tpu_custom_call.1} parent=59 // pred_region
          %s560 = sand.u32 %s176, 1
          %s561 = scalar_lea.sflag [#allocation9], %s560
          %s562 = sand.u32 %s176, 1
          %s563 = smul.addr %s562, 8
          %s564 = scalar_lea.vmem [#allocation8], %s563
          %565 = dma.done %s561, 128
        $region68: #{tpu_custom_call.1} parent=59 // pred_fallthru
          _
      $region60: #{tpu_custom_call.1} parent=5 // pred_fallthru
        _
    $region6: #{tpu_custom_call.1} parent=1 // loop_footer
      %s25 = sadd.s32 1, %s21
    $region7: #{tpu_custom_call.1} parent=1 // loop_footer_branch
      %20 = sbr.rel target = $region3
    $region8: #{tpu_custom_call.1} parent=1 // loop_exit
      _
    %566 = vsyncpa [#allocation3], 1
    %s567 = scalar_lea.sflag [#allocation3], 1
    %568 = vsyncpa %s567, 1
    %569 = vsyncpa [#allocation6], 1
    %s570 = scalar_lea.sflag [#allocation6], 1
    %571 = vsyncpa %s570, 1
    %572 = vsyncpa [#allocation4], 1
    %s573 = scalar_lea.sflag [#allocation4], 1
    %574 = vsyncpa %s573, 1
    %575 = vsyncpa [#allocation9], 1
    %s576 = scalar_lea.sflag [#allocation9], 1
    %577 = vsyncpa %s576, 1

</llo_original>
